<compile_context>
chip_gen: v7x
topology: tpu7x:2x2x1
jax: 0.10.0
libtpu: 0.0.40
codegen_flags: <defaults>
</compile_context>

<pallas_src>
from math import ceil

import jax
import jax.numpy as jnp
import numpy as np
from jax import lax
from jax.experimental import pallas as pl
from jax.experimental.pallas import tpu as pltpu


# ----------------------------------------------------------------------------
# Pallas kernel: per-image pre_count tile = density . prob^T, accumulated over
# HW chunks directly into the resident f32 output block.
# ----------------------------------------------------------------------------
def _pre_count_kernel(prob_ref, dens_ref, out_ref):
    k = pl.program_id(2)

    @pl.when(k == 0)
    def _():
        out_ref[...] = jnp.zeros_like(out_ref)

    p = prob_ref[...]                 # (Nt, THW)
    d = dens_ref[...]                 # (1,  THW)
    if d.dtype != p.dtype:
        d = d.astype(p.dtype)         # density traffic is tiny; cast in-kernel
    out_ref[...] += lax.dot_general(
        d, p,
        dimension_numbers=(((1,), (1,)), ((), ())),
        preferred_element_type=jnp.float32,
    )                                 # (1, Nt) f32 partial (MXU, f32 accum)


# ----------------------------------------------------------------------------
# Tiling helpers
# ----------------------------------------------------------------------------
def _round_up(x, m):
    return -(-x // m) * m


def _vmem_capacity_bytes():
    try:
        return int(pltpu.get_tpu_info().vmem_capacity_bytes)
    except Exception:
        return 64 * 1024 * 1024  # conservative (v7x per-TC) fallback


def _pick_tile_n(B, N):
    """Split N only when it buys megacore work (tiny batch) and stays lane-dense."""
    if B >= 2 or N % 256 != 0:
        return N
    return N // 2


def _plan_hw_tiling(Nt, HW, itemsize, budget_bytes, tile_hw=None):
    """Choose HW tile (multiple of 128) and the padded HW it implies."""
    hw128 = _round_up(HW, 128)
    if tile_hw is not None:
        assert tile_hw % 128 == 0, "tile_hw must be a multiple of 128"
        thw = tile_hw
    else:
        # Largest tile (multiple of 128) whose prob slab fits the budget.
        cap = max(128, (budget_bytes // max(1, Nt * itemsize)) // 128 * 128)
        thw_max = min(cap, hw128)
        grid_k = -(-hw128 // thw_max)
        # Near-equal chunks -> minimal zero padding while staying under budget.
        thw = min(_round_up(-(-hw128 // grid_k), 128), thw_max)
    grid_k = -(-hw128 // thw)
    hw_pad = thw * grid_k
    return thw, grid_k, hw_pad


# ----------------------------------------------------------------------------
# pallas_call wrapper: pre_count [B,1,N] (f32)
# ----------------------------------------------------------------------------
def _pre_count_pallas(prob, density_flat, tile_hw=None):
    """prob [B,N,HW], density_flat [B,1,HW] -> pre_count [B,1,N] (f32)."""
    B, N, HW = prob.shape
    assert density_flat.shape == (B, 1, HW)

    p_item = jnp.dtype(prob.dtype).itemsize
    d_item = jnp.dtype(density_flat.dtype).itemsize

    capacity = _vmem_capacity_bytes()
    # ~capacity/6 per prob tile -> double-buffered prob ~capacity/3:
    #   v5e/v6e (128 MiB): ~21 MiB tiles; v7x (64 MiB): ~10 MiB tiles.
    budget = max(4 * 1024 * 1024, capacity // 6)

    Nt = _pick_tile_n(B, N)
    grid_n = N // Nt
    thw, grid_k, hw_pad = _plan_hw_tiling(Nt, HW, p_item, budget, tile_hw)

    if hw_pad != HW:
        pad = hw_pad - HW
        # Zero padding is exact for the dot product.
        prob = jnp.pad(prob, ((0, 0), (0, 0), (0, pad)))
        density_flat = jnp.pad(density_flat, ((0, 0), (0, 0), (0, pad)))

    # VMEM sizing: double-buffered inputs + (conservatively double) output.
    tile_bytes = (2 * Nt * thw * p_item
                  + 2 * 1 * thw * d_item
                  + 2 * 1 * Nt * 4)
    vmem_limit = int(min(capacity * 0.8,
                         max(32 * 1024 * 1024, tile_bytes * 1.5)))

    cost = pl.CostEstimate(
        flops=2 * B * N * hw_pad,
        transcendentals=0,
        bytes_accessed=(B * N * hw_pad * p_item
                        + B * hw_pad * d_item
                        + B * N * 4),
    )

    out = pl.pallas_call(
        _pre_count_kernel,
        out_shape=jax.ShapeDtypeStruct((B, 1, N), jnp.float32),
        grid_spec=pltpu.PrefetchScalarGridSpec(
            num_scalar_prefetch=0,
            grid=(B, grid_n, grid_k),
            in_specs=[
                pl.BlockSpec((None, Nt, thw), lambda b, n, k: (b, n, k)),
                pl.BlockSpec((None, 1, thw), lambda b, n, k: (b, 0, k)),
            ],
            out_specs=pl.BlockSpec((None, 1, Nt), lambda b, n, k: (b, 0, n)),
        ),
        compiler_params=pltpu.CompilerParams(
            dimension_semantics=("parallel", "parallel", "arbitrary"),
            vmem_limit_bytes=vmem_limit,
        ),
        cost_estimate=cost,
    )(prob, density_flat)
    return out


# ----------------------------------------------------------------------------
# Wrapper: residuals + k-smallest selection in plain XLA (tiny, B*N scalars)
# ----------------------------------------------------------------------------
def bay_loss(prob, density_flat, target_full, tile_hw=None):
    """prob [B,N,HW], density_flat [B,1,HW], target_full [B,1,N] -> scalar."""
    B, N, HW = prob.shape
    num = ceil(0.9 * (N - 1))  # k smallest kept over the non-background rows

    pre_count = _pre_count_pallas(prob, density_flat, tile_hw)      # [B,1,N]
    res = jnp.abs(target_full.reshape(B, N) - pre_count.reshape(B, N))

    main = res[:, : N - 1]                                          # [B, N-1]
    smallest = jnp.sort(main, axis=1)[:, :num]                      # k smallest
    loss_per_image = jnp.sum(smallest, axis=1) + res[:, N - 1]      # + background
    return jnp.sum(loss_per_image) / B


# ----------------------------------------------------------------------------
# Pure-JAX reference (mirrors the PyTorch module)
# ----------------------------------------------------------------------------
def bay_loss_reference(prob, density_flat, target_full):
    B, N, HW = prob.shape
    num = ceil(0.9 * (N - 1))
    loss = 0.0
    for b in range(B):
        pre_count = jnp.sum(
            density_flat[b, 0].astype(jnp.float32)[None, :]
            * prob[b].astype(jnp.float32), axis=1)                   # (N,)
        res = jnp.abs(target_full[b, 0] - pre_count)
        smallest = jnp.sort(res[:-1])[:num]
        loss = loss + jnp.sum(smallest) + res[-1]
    return loss / B


if __name__ == "__main__":
    key = jax.random.PRNGKey(0)
    k1, k2, k3, k4, k5, k6 = jax.random.split(key, 6)

    # ------------------------------------------------------------------
    # Case 1: B=2, f32 inputs, forced multi-chunk HW reduction (tile_hw=128).
    # ------------------------------------------------------------------
    B, H, W, N = 2, 16, 16, 16
    HW = H * W

    prob = jax.random.uniform(k1, (B, N, HW), dtype=jnp.float32)
    prob = prob / jnp.sum(prob, axis=-1, keepdims=True)
    pre_density = jax.random.uniform(k2, (B, 1, H, W), dtype=jnp.float32)
    density_flat = pre_density.reshape(B, 1, HW)
    target_pts = jax.random.uniform(k3, (B, N - 1), dtype=jnp.float32) * 2.0
    target_full = jnp.concatenate(
        [target_pts, jnp.zeros((B, 1), jnp.float32)], axis=1).reshape(B, 1, N)

    loss = bay_loss(prob, density_flat, target_full, tile_hw=128)
    loss = jax.block_until_ready(loss)
    ref = bay_loss_reference(prob, density_flat, target_full)
    np.testing.assert_allclose(np.asarray(loss), np.asarray(ref),
                               rtol=1e-4, atol=1e-4)

    # ------------------------------------------------------------------
    # Case 2: B=1, N=256 (N-split "parallel" axis), HW not a multiple of 128
    # (exercises zero-padding of the pixel axis).
    # ------------------------------------------------------------------
    B2, N2, H2, W2 = 1, 256, 10, 13
    HW2 = H2 * W2

    prob2 = jax.random.uniform(k4, (B2, N2, HW2), dtype=jnp.float32)
    prob2 = prob2 / jnp.sum(prob2, axis=-1, keepdims=True)
    dens2 = jax.random.uniform(k5, (B2, 1, H2, W2),
                               dtype=jnp.float32).reshape(B2, 1, HW2)
    tgt_pts2 = jax.random.uniform(k6, (B2, N2 - 1), dtype=jnp.float32) * 2.0
    tgt2 = jnp.concatenate(
        [tgt_pts2, jnp.zeros((B2, 1), jnp.float32)], axis=1).reshape(B2, 1, N2)

    loss2 = bay_loss(prob2, dens2, tgt2)
    loss2 = jax.block_until_ready(loss2)
    ref2 = bay_loss_reference(prob2, dens2, tgt2)
    np.testing.assert_allclose(np.asarray(loss2), np.asarray(ref2),
                               rtol=1e-4, atol=1e-4)

    # ------------------------------------------------------------------
    # Case 3: natively-bf16 prob from the producer (no wrapper cast pass),
    # density stays f32; kernel casts density in-VMEM for a pure-bf16 dot.
    # ------------------------------------------------------------------
    prob_bf = prob.astype(jnp.bfloat16)          # simulates a bf16 producer
    loss_bf = bay_loss(prob_bf, density_flat, target_full, tile_hw=128)
    loss_bf = jax.block_until_ready(loss_bf)
    prob_q = prob_bf.astype(jnp.float32)
    dens_q = density_flat.astype(jnp.bfloat16).astype(jnp.float32)
    ref_bf = bay_loss_reference(prob_q, dens_q, target_full)
    np.testing.assert_allclose(np.asarray(loss_bf), np.asarray(ref_bf),
                               rtol=1e-3, atol=1e-3)

    print("KERNEL_OK")
</pallas_src>

<mosaic_0001>
module attributes {stable_mosaic.version = 11 : i64} {
  func.func @_pre_count_kernel(%arg0: i32, %arg1: i32, %arg2: i32, %arg3: memref<1x16x128xf32, #tpu.memory_space<vmem>>, %arg4: memref<1x1x128xf32, #tpu.memory_space<vmem>>, %arg5: memref<1x1x16xf32, #tpu.memory_space<vmem>>) attributes {dimension_semantics = [#tpu.dimension_semantics<parallel>, #tpu.dimension_semantics<parallel>, #tpu.dimension_semantics<arbitrary>], iteration_bounds = array<i64: 2, 1, 2>, scalar_prefetch = 0 : i64, scratch_operands = 0 : i64, tpu.core_type = #tpu.core_type<tc>, window_params = [{transform_indices = @transform_0, window_bounds = array<i64: 1, 16, 128>}, {transform_indices = @transform_1, window_bounds = array<i64: 1, 1, 128>}, {transform_indices = @transform_2, window_bounds = array<i64: 1, 1, 16>}]} {
    %c0_i32 = arith.constant 0 : i32
    %0 = arith.cmpi eq, %arg2, %c0_i32 : i32
    %1 = arith.extui %0 : i1 to i32
    %c0_i32_0 = arith.constant 0 : i32
    %2 = arith.cmpi ne, %1, %c0_i32_0 : i32
    scf.if %2 {
      %cst_12 = arith.constant 0.000000e+00 : f32
      %14 = vector.broadcast %cst_12 : f32 to vector<1x16xf32>
      %c0_13 = arith.constant 0 : index
      %c0_14 = arith.constant 0 : index
      %c0_15 = arith.constant 0 : index
      %15 = vector.load %arg5[%c0_13, %c0_14, %c0_15] : memref<1x1x16xf32, #tpu.memory_space<vmem>>, vector<1x1x16xf32>
      %16 = vector.shape_cast %15 : vector<1x1x16xf32> to vector<1x16xf32>
      %17 = vector.shape_cast %14 : vector<1x16xf32> to vector<1x1x16xf32>
      tpu.vector_store %arg5[%c0_13, %c0_14, %c0_15], %17 {strides = array<i32>} : memref<1x1x16xf32, #tpu.memory_space<vmem>>, vector<1x1x16xf32>,
    } else {
    }
    %c0 = arith.constant 0 : index
    %c0_1 = arith.constant 0 : index
    %c0_2 = arith.constant 0 : index
    %3 = vector.load %arg3[%c0, %c0_1, %c0_2] : memref<1x16x128xf32, #tpu.memory_space<vmem>>, vector<1x16x128xf32>
    %4 = vector.shape_cast %3 : vector<1x16x128xf32> to vector<16x128xf32>
    %c0_3 = arith.constant 0 : index
    %c0_4 = arith.constant 0 : index
    %c0_5 = arith.constant 0 : index
    %5 = vector.load %arg4[%c0_3, %c0_4, %c0_5] : memref<1x1x128xf32, #tpu.memory_space<vmem>>, vector<1x1x128xf32>
    %6 = vector.shape_cast %5 : vector<1x1x128xf32> to vector<1x128xf32>
    %c0_6 = arith.constant 0 : index
    %c0_7 = arith.constant 0 : index
    %c0_8 = arith.constant 0 : index
    %7 = vector.load %arg5[%c0_6, %c0_7, %c0_8] : memref<1x1x16xf32, #tpu.memory_space<vmem>>, vector<1x1x16xf32>
    %8 = vector.shape_cast %7 : vector<1x1x16xf32> to vector<1x16xf32>
    %cst = arith.constant dense<0.000000e+00> : vector<1x16xf32>
    %9 = tpu.matmul %6, %4, %cst {dimension_numbers = #tpu.dot_dimension_numbers<[1], [1], [0], [0], [0, 0, 1, 0], [], []>} : vector<1x128xf32>, vector<16x128xf32>, vector<1x16xf32> -> vector<1x16xf32>
    %10 = arith.addf %8, %9 : vector<1x16xf32>
    %c0_9 = arith.constant 0 : index
    %c0_10 = arith.constant 0 : index
    %c0_11 = arith.constant 0 : index
    %11 = vector.load %arg5[%c0_9, %c0_10, %c0_11] : memref<1x1x16xf32, #tpu.memory_space<vmem>>, vector<1x1x16xf32>
    %12 = vector.shape_cast %11 : vector<1x1x16xf32> to vector<1x16xf32>
    %13 = vector.shape_cast %10 : vector<1x16xf32> to vector<1x1x16xf32>
    tpu.vector_store %arg5[%c0_9, %c0_10, %c0_11], %13 {strides = array<i32>} : memref<1x1x16xf32, #tpu.memory_space<vmem>>, vector<1x1x16xf32>,
    return
  }
  func.func @transform_0(%arg0: i32, %arg1: i32, %arg2: i32) -> (i32, i32, i32) {
    %c0_i32 = arith.constant 0 : i32
    return %arg0, %arg1, %arg2 : i32, i32, i32
  }
  func.func @transform_1(%arg0: i32, %arg1: i32, %arg2: i32) -> (i32, i32, i32) {
    %c0_i32 = arith.constant 0 : i32
    %c0_i32_0 = arith.constant 0 : i32
    return %arg0, %c0_i32, %arg2 : i32, i32, i32
  }
  func.func @transform_2(%arg0: i32, %arg1: i32, %arg2: i32) -> (i32, i32, i32) {
    %c0_i32 = arith.constant 0 : i32
    %c0_i32_0 = arith.constant 0 : i32
    return %arg0, %c0_i32, %arg1 : i32, i32, i32
  }
}

</mosaic_0001>

<llo_original>
// kernel: tpu_custom_call.1
$region0: #{tpu_custom_call.1}
  #allocation0 [shape = 'u32[]', space=smem, size = 0x4, offset = 0x4, fixed_abs, tag = 'smem constant byte address 0x4 - core index']
  #allocation1 [shape = 'u32[144,128]{1,0:T(1,128)}', space=vmem, size = 0x12000, scoped, tag = 'internal scratch']
  %s0 = inlined_call_operand.hbm [shape: f32[2,16,256], index: 0, kind: input, shape index: {}]
  %s1 = inlined_call_operand.hbm [shape: f32[2,1,256], index: 1, kind: input, shape index: {}]
  %s2 = inlined_call_operand.hbm [shape: f32[2,1,16], index: 2, kind: output, shape index: {}]
  %s3 = sld [smem:[#allocation0]]
  $region53: #{tpu_custom_call.1} parent=0
    _
  %s5 = ssub.s32 1, %s3
  %s6 = scalar_select 0, %s5, %s3
  $region1: #{tpu_custom_call.1} parent=0
    #allocation2 [shape = 'u8[16384]{0}', space=vmem, size = 0x4000, scoped, tag = 'input window, operand 0']
    #allocation3 [shape = 's32[2]{0}', space=sflag, size = 0x8, scoped, tag = 'scoped memory for tpu_custom_call.1']
    #allocation4 [shape = 's32[2]{0}', space=sflag, size = 0x8, scoped, tag = 'scoped memory for tpu_custom_call.1']
    #allocation5 [shape = 'u8[1024]{0}', space=vmem, size = 0x400, scoped, tag = 'input window, operand 1']
    #allocation6 [shape = 's32[2]{0}', space=sflag, size = 0x8, scoped, tag = 'scoped memory for tpu_custom_call.1']
    #allocation7 [shape = 'u8[1024]{0}', space=vmem, size = 0x400, scoped, tag = 'output window, operand 0']
    %7 = vsyncpa [#allocation3], 0
    %s8 = scalar_lea.sflag [#allocation3], 1
    %9 = vsyncpa %s8, 0
    %10 = vsyncpa [#allocation6], 0
    %s11 = scalar_lea.sflag [#allocation6], 1
    %12 = vsyncpa %s11, 0
    %13 = vsyncpa [#allocation4], 0
    %s14 = scalar_lea.sflag [#allocation4], 1
    %15 = vsyncpa %s14, 0
    loop: start=0, step=1, limit=6
    $region2: #{tpu_custom_call.1} parent=1 // loop_pre_header
      _
    $region3: #{tpu_custom_call.1} parent=1 // loop_header
      %s17 = sphi 0, %s21
      %p18 = scmp.ge.s32.totalorder %s17, 6
      %s24 = sphi 0, %s43
      %s25 = sphi 0, %s39
      %s26 = sphi 0, %s35
      %s27 = sphi 0, %s24
      %s28 = sphi 0, %s25
      %s29 = sphi 0, %s26
      %s30 = sphi 0, %s27
      %s31 = sphi 0, %s28
      %s32 = sphi 0, %s29
      %s50 = sphi 0, %s52
      %s53 = sphi 0, %s50
      %s54 = sphi 0, %s53
      %s70 = sphi 0, %s54
      %s78 = sphi 0, %s80
      %s81 = sphi 0, %s78
      %s82 = sphi 0, %s81
      %s98 = sphi 0, %s82
      %s106 = sphi 0, %s108
      %s109 = sphi 0, %s106
      %s110 = sphi 0, %s109
      %s126 = sphi 0, %s110
    $region4: #{tpu_custom_call.1} parent=1 // loop_header_branch
      %20 = sbr.rel (%p18) target = $region8
    $region5: #{tpu_custom_call.1} parent=1 // loop_body
      %s22 = ssub.s32 %s17, 1
      %s23 = ssub.s32 %s17, 2
      %s33 = sadd.s32 1, %s26
      %p34 = scmp.ge.s32.totalorder %s33, 2
      %s35 = scalar_select %p34, 0, %s33
      %s36 = sadd.s32 1, %s25
      %s37 = scalar_select %p34, %s36, %s25
      %p38 = scmp.ge.s32.totalorder %s37, 1
      %s39 = scalar_select %p38, 0, %s37
      %s40 = sadd.s32 1, %s24
      %s41 = scalar_select %p38, %s40, %s24
      %p42 = scmp.ge.s32.totalorder %s41, 2
      %s43 = scalar_select %p42, 0, %s41
      %s44 = ssub.s32 %s24, %s43
      %s45 = ssub.s32 %s25, %s39
      %s46 = sor.u32 %s44, %s45
      %s47 = ssub.s32 %s26, %s35
      %s48 = sor.u32 %s46, %s47
      %p49 = scmp.eq.s32.totalorder %s48, 0
      %s51 = sadd.s32 %s50, 1
      %s52 = scalar_select %p49, %s50, %s51
      %p55 = pneg %p49
      %p56 = scmp.eq.s32.totalorder %s17, 3
      %p57 = por %p55, %p56
      %p58 = scmp.ne.s32.totalorder %s50, %s53
      %p59 = scmp.eq.s32.totalorder %s17, 0
      %p60 = por %p58, %p59
      %p61 = scmp.ne.s32.totalorder %s50, %s53
      %p62 = scmp.eq.s32.totalorder %s22, 3
      %p63 = por %p61, %p62
      %p64 = scmp.ne.s32.totalorder %s53, %s54
      %p65 = scmp.eq.s32.totalorder %s22, 0
      %p66 = por %p64, %p65
      %p67 = scmp.ne.s32.totalorder %s53, %s54
      %p68 = scmp.eq.s32.totalorder %s23, 3
      %p69 = por %p67, %p68
      %p71 = scmp.ne.s32.totalorder %s54, %s70
      %p72 = scmp.eq.s32.totalorder %s23, 0
      %p73 = por %p71, %p72
      %s74 = ssub.s32 %s24, %s43
      %s75 = ssub.s32 %s26, %s35
      %s76 = sor.u32 %s74, %s75
      %p77 = scmp.eq.s32.totalorder %s76, 0
      %s79 = sadd.s32 %s78, 1
      %s80 = scalar_select %p77, %s78, %s79
      %p83 = pneg %p77
      %p84 = scmp.eq.s32.totalorder %s17, 3
      %p85 = por %p83, %p84
      %p86 = scmp.ne.s32.totalorder %s78, %s81
      %p87 = scmp.eq.s32.totalorder %s17, 0
      %p88 = por %p86, %p87
      %p89 = scmp.ne.s32.totalorder %s78, %s81
      %p90 = scmp.eq.s32.totalorder %s22, 3
      %p91 = por %p89, %p90
      %p92 = scmp.ne.s32.totalorder %s81, %s82
      %p93 = scmp.eq.s32.totalorder %s22, 0
      %p94 = por %p92, %p93
      %p95 = scmp.ne.s32.totalorder %s81, %s82
      %p96 = scmp.eq.s32.totalorder %s23, 3
      %p97 = por %p95, %p96
      %p99 = scmp.ne.s32.totalorder %s82, %s98
      %p100 = scmp.eq.s32.totalorder %s23, 0
      %p101 = por %p99, %p100
      %s102 = ssub.s32 %s24, %s43
      %s103 = ssub.s32 %s25, %s39
      %s104 = sor.u32 %s102, %s103
      %p105 = scmp.eq.s32.totalorder %s104, 0
      %s107 = sadd.s32 %s106, 1
      %s108 = scalar_select %p105, %s106, %s107
      %p111 = pneg %p105
      %p112 = scmp.eq.s32.totalorder %s17, 3
      %p113 = por %p111, %p112
      %p114 = scmp.ne.s32.totalorder %s106, %s109
      %p115 = scmp.eq.s32.totalorder %s17, 0
      %p116 = por %p114, %p115
      %p117 = scmp.ne.s32.totalorder %s106, %s109
      %p118 = scmp.eq.s32.totalorder %s22, 3
      %p119 = por %p117, %p118
      %p120 = scmp.ne.s32.totalorder %s109, %s110
      %p121 = scmp.eq.s32.totalorder %s22, 0
      %p122 = por %p120, %p121
      %p123 = scmp.ne.s32.totalorder %s109, %s110
      %p124 = scmp.eq.s32.totalorder %s23, 3
      %p125 = por %p123, %p124
      %p127 = scmp.ne.s32.totalorder %s110, %s126
      %p128 = scmp.eq.s32.totalorder %s23, 0
      %p129 = por %p127, %p128
      %p130 = scmp.le.s32.totalorder 1, %s17
      %p131 = scmp.lt.s32.totalorder %s17, 5
      %p132 = pnand %p130, %p131
      %p133 = pneg %p132
      // Predicated region
      $region9: #{tpu_custom_call.1} parent=5 // pred_check
        _
      $region10: #{tpu_custom_call.1} parent=5 // pred_check_branch
        %135 = sbr.rel (%p132) target = $region12
      $region11: #{tpu_custom_call.1} parent=5 // pred_region
        %s136 = ssub.s32 %s17, 1
      $region12: #{tpu_custom_call.1} parent=5 // pred_fallthru
        _
      %p137 = scmp.lt.s32.totalorder %s17, 4
      // Predicated region
      $region13: #{tpu_custom_call.1} parent=5 // pred_check
        %p138 = pneg %p137
      $region14: #{tpu_custom_call.1} parent=5 // pred_check_branch
        %140 = sbr.rel (%p138) target = $region16
      $region15: #{tpu_custom_call.1} parent=5 // pred_region
        // Predicated region
        $region17: #{tpu_custom_call.1} parent=15 // pred_check
          %p141 = pneg %p60
        $region18: #{tpu_custom_call.1} parent=15 // pred_check_branch
          %143 = sbr.rel (%p141) target = $region20
        $region19: #{tpu_custom_call.1} parent=15 // pred_region
          %s144 = sand.u32 %s50, 1
          %s145 = scalar_lea.sflag [#allocation3], %s144
          %s146 = sand.u32 %s50, 1
          %s147 = smul.addr %s146, 16
          %s148 = scalar_lea.vmem [#allocation2], %s147
          %s149 = smul.u32 2, %s25
          %s151 = ssub.s32 256, 256
          %152 = vsyncadd %s145, %s151
          %s153 = smul.addr %s149, 2
          %s154 = sadd.s32 %s26, %s153
          %s155 = smul.addr %s24, 4
          %s156 = sadd.s32 %s154, %s155
          %s157 = smul.addr %s156, 128
          %s158 = scalar_lea.hbm %s0, %s157
          %s159 = sshll.u32 %s148, 4
          %s160 = int_to_ptr.vmem [resolvable:$true] %s159
          %165 = dma.hbm_to_vmem [thread:$0]  %s158, 256, %s160, %s145, 256, 128, 8
        $region20: #{tpu_custom_call.1} parent=15 // pred_fallthru
          _
        // Predicated region
        $region21: #{tpu_custom_call.1} parent=15 // pred_check
          %p166 = pneg %p88
        $region22: #{tpu_custom_call.1} parent=15 // pred_check_branch
          %168 = sbr.rel (%p166) target = $region24
        $region23: #{tpu_custom_call.1} parent=15 // pred_region
          %s169 = sand.u32 %s78, 1
          %s170 = scalar_lea.sflag [#allocation6], %s169
          %s171 = sand.u32 %s78, 1
          %s172 = scalar_lea.vmem [#allocation5], %s171
          %s174 = ssub.s32 16, 16
          %175 = vsyncadd %s170, %s174
          %s176 = smul.addr %s24, 2
          %s177 = sadd.s32 %s26, %s176
          %s178 = smul.addr %s177, 16
          %s179 = scalar_lea.hbm %s1, %s178
          %s181 = sshll.u32 %s172, 4
          %s182 = int_to_ptr.vmem [resolvable:$true] %s181
          %184 = dma.hbm_to_vmem [thread:$0]  %s179, 16, %s182, %s170
        $region24: #{tpu_custom_call.1} parent=15 // pred_fallthru
          _
      $region16: #{tpu_custom_call.1} parent=5 // pred_fallthru
        _
      %p185 = scmp.le.s32.totalorder 1, %s17
      %p186 = scmp.lt.s32.totalorder %s17, 5
      %p187 = pnand %p185, %p186
      %p188 = pneg %p187
      // Predicated region
      $region25: #{tpu_custom_call.1} parent=5 // pred_check
        _
      $region26: #{tpu_custom_call.1} parent=5 // pred_check_branch
        %190 = sbr.rel (%p187) target = $region28
      $region27: #{tpu_custom_call.1} parent=5 // pred_region
        %s191 = ssub.s32 %s17, 1
        %s192 = sand.u32 %s53, 1
        %s193 = scalar_lea.sflag [#allocation3], %s192
        %s194 = sand.u32 %s53, 1
        %s195 = smul.addr %s194, 16
        %s196 = scalar_lea.vmem [#allocation2], %s195
        // Predicated region
        $region29: #{tpu_custom_call.1} parent=27 // pred_check
          %p197 = pneg %p66
        $region30: #{tpu_custom_call.1} parent=27 // pred_check_branch
          %199 = sbr.rel (%p197) target = $region32
        $region31: #{tpu_custom_call.1} parent=27 // pred_region
          %200 = dma.done %s193, 256
        $region32: #{tpu_custom_call.1} parent=27 // pred_fallthru
          _
        %s201 = sand.u32 %s81, 1
        %s202 = scalar_lea.sflag [#allocation6], %s201
        %s203 = sand.u32 %s81, 1
        %s204 = scalar_lea.vmem [#allocation5], %s203
        // Predicated region
        $region33: #{tpu_custom_call.1} parent=27 // pred_check
          %p205 = pneg %p94
        $region34: #{tpu_custom_call.1} parent=27 // pred_check_branch
          %207 = sbr.rel (%p205) target = $region36
        $region35: #{tpu_custom_call.1} parent=27 // pred_region
          %208 = dma.done %s202, 16
        $region36: #{tpu_custom_call.1} parent=27 // pred_fallthru
          _
        %s209 = sand.u32 %s53, 1
        %s210 = scalar_lea.sflag [#allocation3], %s209
        %s211 = sand.u32 %s53, 1
        %s212 = smul.addr %s211, 16
        %s213 = scalar_lea.vmem [#allocation2], %s212
        %p214 = pneg %p66
        %p215 = pneg %p63
        %s216 = sand.u32 %s81, 1
        %s217 = scalar_lea.sflag [#allocation6], %s216
        %s218 = sand.u32 %s81, 1
        %s219 = scalar_lea.vmem [#allocation5], %s218
        %p220 = pneg %p94
        %p221 = pneg %p91
        %p222 = pneg %p122
        %p223 = pneg %p119
        %s224 = sand.u32 %s109, 1
        %s225 = scalar_lea.sflag [#allocation4], %s224
        %s226 = sand.u32 %s109, 1
        %s227 = scalar_lea.vmem [#allocation7], %s226
        %s228 = smul.u32 2, %s28
        %p229 = scmp.eq.s32.totalorder %s29, 0
        // Predicated region
        $region37: #{tpu_custom_call.1} parent=27 // pred_check
          %p230 = pneg %p229
        $region38: #{tpu_custom_call.1} parent=27 // pred_check_branch
          %232 = sbr.rel (%p230) target = $region40
        $region39: #{tpu_custom_call.1} parent=27 // pred_region
          %vm233 = vcmask 122880
          %234 = vst.msk [vmem:[%s227] sm:$0x1] %vm233, 0.0
        $region40: #{tpu_custom_call.1} parent=27 // pred_fallthru
          _
        %v235 = vld [vmem:[%s196] sm:$0xff]
        %v236 = vld [vmem:[%s196 + $0x8] sm:$0xff]
        %v237 = vld [vmem:[%s204] sm:$0x1]
        %v238 = vld [vmem:[%s227] sm:$0x1]
        %239 = vmatprep.subr.mxu0 0.0
        %240 = vmatpush1.xpose.msra.mxu0 %v235
        %241 = vmatprep.subr.mxu0 0.0
        %242 = vmatpush1.xpose.msra.mxu0 %v236
        %243 = vmatprep.subr.mxu0 0.0
        %244 = vmatpush1.xpose.msra.mxu0 0.0
        %245 = vmatprep.subr.mxu0 0.0
        %246 = vmatpush1.xpose.msra.mxu0 0.0
        %247 = vmatprep.subr.mxu0 0.0
        %248 = vmatpush1.xpose.msra.mxu0 0.0
        %249 = vmatprep.subr.mxu0 0.0
        %250 = vmatpush1.xpose.msra.mxu0 0.0
        %251 = vmatprep.subr.mxu0 0.0
        %252 = vmatpush1.xpose.msra.mxu0 0.0
        %253 = vmatprep.subr.mxu0 0.0
        %254 = vmatpush1.xpose.msra.mxu0 0.0
        %255 = vmatprep.subr.mxu0 0.0
        %256 = vmatpush1.xpose.msra.mxu0 0.0
        %257 = vmatprep.subr.mxu0 0.0
        %258 = vmatpush1.xpose.msra.mxu0 0.0
        %259 = vmatprep.subr.mxu0 0.0
        %260 = vmatpush1.xpose.msra.mxu0 0.0
        %261 = vmatprep.subr.mxu0 0.0
        %262 = vmatpush1.xpose.msra.mxu0 0.0
        %263 = vmatprep.subr.mxu0 0.0
        %264 = vmatpush1.xpose.msra.mxu0 0.0
        %265 = vmatprep.subr.mxu0 0.0
        %266 = vmatpush1.xpose.msra.mxu0 0.0
        %267 = vmatprep.subr.mxu0 0.0
        %268 = vmatpush1.xpose.msra.mxu0 0.0
        %269 = vmatprep.subr.mxu0 0.0
        %270 = vmatpush1.xpose.msra.mxu0 0.0
        %271 = vmatprep.subr.mxu0 0.0
        %272 = vmatpush1.xpose.msra.mxu0 0.0
        %273 = vmatprep.subr.mxu0 0.0
        %274 = vmatpush1.xpose.msra.mxu0 0.0
        %275 = vmatprep.subr.mxu0 0.0
        %276 = vmatpush1.xpose.msra.mxu0 0.0
        %277 = vmatprep.subr.mxu0 0.0
        %278 = vmatpush1.xpose.msra.mxu0 0.0
        %279 = vmatprep.subr.mxu0 0.0
        %280 = vmatpush1.xpose.msra.mxu0 0.0
        %281 = vmatprep.subr.mxu0 0.0
        %282 = vmatpush1.xpose.msra.mxu0 0.0
        %283 = vmatprep.subr.mxu0 0.0
        %284 = vmatpush1.xpose.msra.mxu0 0.0
        %285 = vmatprep.subr.mxu0 0.0
        %286 = vmatpush1.xpose.msra.mxu0 0.0
        %287 = vmatprep.subr.mxu0 0.0
        %288 = vmatpush1.xpose.msra.mxu0 0.0
        %289 = vmatprep.subr.mxu0 0.0
        %290 = vmatpush1.xpose.msra.mxu0 0.0
        %291 = vmatprep.subr.mxu0 0.0
        %292 = vmatpush1.xpose.msra.mxu0 0.0
        %293 = vmatprep.subr.mxu0 0.0
        %294 = vmatpush1.xpose.msra.mxu0 0.0
        %295 = vmatprep.subr.mxu0 0.0
        %296 = vmatpush1.xpose.msra.mxu0 0.0
        %297 = vmatprep.subr.mxu0 0.0
        %298 = vmatpush1.xpose.msra.mxu0 0.0
        %299 = vmatprep.subr.mxu0 0.0
        %300 = vmatpush1.xpose.msra.mxu0 0.0
        %301 = vmatprep.subr.mxu0 0.0
        %302 = vmatpush1.xpose.msra.mxu0 0.0
        %303 = vmatprep.mubr.f32.mxu0 0.0
        %304 = vmatmul.mubr.f32.gmra.mrb[0].mxu0 %v237
        %v305 = vpop.f32.mrb[0].mxu0
        %v306 = vadd.f32 0.0, %v305
        %v307 = vpop.f32.mrb[0].mxu0
        %308 = vdwg.mxu0
        %v309 = vadd.f32 %v238, %v306
        %vm310 = vcmask 122880
        %311 = vst.msk [vmem:[%s227] sm:$0x1] %vm310, %v309
        %s312 = sand.u32 %s109, 1
        %s313 = scalar_lea.sflag [#allocation4], %s312
        %s314 = sand.u32 %s109, 1
        %s315 = scalar_lea.vmem [#allocation7], %s314
        // Predicated region
        $region41: #{tpu_custom_call.1} parent=27 // pred_check
          %p316 = pneg %p119
        $region42: #{tpu_custom_call.1} parent=27 // pred_check_branch
          %318 = sbr.rel (%p316) target = $region44
        $region43: #{tpu_custom_call.1} parent=27 // pred_region
          %s320 = ssub.s32 16, 16
          %321 = vsyncadd %s313, %s320
          %s322 = sadd.s32 %s28, %s27
          %s323 = smul.addr %s322, 16
          %s324 = scalar_lea.hbm %s2, %s323
          %s326 = sshll.u32 %s315, 4
          %s327 = int_to_ptr.vmem [resolvable:$true] %s326
          %329 = dma.vmem_to_hbm [thread:$0]  %s327, 16, %s324, %s313
        $region44: #{tpu_custom_call.1} parent=27 // pred_fallthru
          _
      $region28: #{tpu_custom_call.1} parent=5 // pred_fallthru
        _
      %p330 = scmp.le.s32.totalorder 2, %s17
      // Predicated region
      $region45: #{tpu_custom_call.1} parent=5 // pred_check
        %p331 = pneg %p330
      $region46: #{tpu_custom_call.1} parent=5 // pred_check_branch
        %333 = sbr.rel (%p331) target = $region48
      $region47: #{tpu_custom_call.1} parent=5 // pred_region
        %s334 = ssub.s32 %s17, 2
        // Predicated region
        $region49: #{tpu_custom_call.1} parent=47 // pred_check
          %p335 = pneg %p125
        $region50: #{tpu_custom_call.1} parent=47 // pred_check_branch
          %337 = sbr.rel (%p335) target = $region52
        $region51: #{tpu_custom_call.1} parent=47 // pred_region
          %s338 = sand.u32 %s110, 1
          %s339 = scalar_lea.sflag [#allocation4], %s338
          %s340 = sand.u32 %s110, 1
          %s341 = scalar_lea.vmem [#allocation7], %s340
          %342 = dma.done %s339, 16
        $region52: #{tpu_custom_call.1} parent=47 // pred_fallthru
          _
      $region48: #{tpu_custom_call.1} parent=5 // pred_fallthru
        _
    $region6: #{tpu_custom_call.1} parent=1 // loop_footer
      %s21 = sadd.s32 1, %s17
    $region7: #{tpu_custom_call.1} parent=1 // loop_footer_branch
      %16 = sbr.rel target = $region3
    $region8: #{tpu_custom_call.1} parent=1 // loop_exit
      _
    %343 = vsyncpa [#allocation3], 1
    %s344 = scalar_lea.sflag [#allocation3], 1
    %345 = vsyncpa %s344, 1
    %346 = vsyncpa [#allocation6], 1
    %s347 = scalar_lea.sflag [#allocation6], 1
    %348 = vsyncpa %s347, 1
    %349 = vsyncpa [#allocation4], 1
    %s350 = scalar_lea.sflag [#allocation4], 1
    %351 = vsyncpa %s350, 1

</llo_original>
